<compile_context>
chip_gen: v7x
topology: tpu7x:2x2x1
jax: 0.10.0
libtpu: 0.0.40
codegen_flags: <defaults>
</compile_context>

<pallas_src>
import jax
import jax.numpy as jnp
from jax.experimental import pallas as pl
from jax.experimental.pallas import tpu as pltpu


def _space_to_depth_kernel(te_ref, to_ref, x_ref, o_ref):
    # te_ref / to_ref: (W, W2) exact 0/1 column-parity selectors (VMEM-resident,
    #                  constant index_map).
    # x_ref:  (rb, W)         rb contiguous input rows (whole channel planes or an
    #                         even-aligned slice of one plane).
    # o_ref:  (4, rb//2, W2)  the 4 parity groups for those rows, torch.cat order.
    rb, W = x_ref.shape
    half = rb // 2

    # Sublane-strided reads: every other input row.  Slice-only Ref indexing.
    rows_even = x_ref[pl.ds(0, half, 2), :]   # h even -> (half, W)
    rows_odd = x_ref[pl.ds(1, half, 2), :]    # h odd  -> (half, W)

    t_even = te_ref[...]                      # [w, j] = (w == 2j)
    t_odd = to_ref[...]                       # [w, j] = (w == 2j + 1)

    # Column-parity selection as exact 0/1 matmuls on the otherwise-idle MXU.
    # TODO(synk): switch to a lane-strided load / lane gather if Mosaic exposes
    # one; that would remove the only non-streaming work in the kernel.
    ee = jnp.dot(rows_even, t_even, preferred_element_type=jnp.float32)
    oe = jnp.dot(rows_odd, t_even, preferred_element_type=jnp.float32)
    eo = jnp.dot(rows_even, t_odd, preferred_element_type=jnp.float32)
    oo = jnp.dot(rows_odd, t_odd, preferred_element_type=jnp.float32)

    # torch.cat group order: (he,we), (ho,we), (he,wo), (ho,wo).
    # Single full-block store (no integer Ref indexers).
    o_ref[...] = jnp.stack([ee, oe, eo, oo], axis=0).astype(o_ref.dtype)


def _rows_per_block(C, H, W, itemsize, budget_bytes=2 << 20):
    """Rows (of the flattened (C*H, W) view) per grid step.

    Candidates are whole numbers of channel planes (d*H, d | C) or even
    sub-divisions of one plane (d | H, d even).  Require rb % 16 == 0 so both
    the input block (rb, W) and output block (rb//2, W2) satisfy the sublane
    (8, ...) tiling rule, and rb * W * itemsize <= budget.  Fall back to the
    full array (always legal) if nothing qualifies.
    """
    total = C * H
    row_bytes = W * itemsize
    cands = {d * H for d in range(1, C + 1) if C % d == 0}
    cands |= {d for d in range(2, H, 2) if H % d == 0}
    legal = [rb for rb in cands
             if rb % 16 == 0 and total % rb == 0 and rb * row_bytes <= budget_bytes]
    return max(legal) if legal else total


def space_to_depth(x):
    """x: (N, C, H, W) -> (N, 4C, H//2, W//2), matching the PyTorch module."""
    N, C, H, W = x.shape
    assert H % 2 == 0 and W % 2 == 0, "space_to_depth expects even H and W"
    H2, W2 = H // 2, W // 2

    # Exact 0/1 column-parity selectors (W, W2).  Tiny; resident in VMEM across
    # the whole grid (constant index_map).
    col = jnp.arange(W, dtype=jnp.int32)[:, None]      # (W, 1)
    ocol = jnp.arange(W2, dtype=jnp.int32)[None, :]    # (1, W2)
    t_even = (col == 2 * ocol).astype(x.dtype)         # (W, W2)
    t_odd = (col == 2 * ocol + 1).astype(x.dtype)      # (W, W2)

    rb = _rows_per_block(C, H, W, x.dtype.itemsize)
    total_rows = C * H
    grid = (N, total_rows // rb)

    # Free reshape: fold channels into the row axis (contiguous, no data movement).
    x_flat = x.reshape(N, total_rows, W)

    out = pl.pallas_call(
        _space_to_depth_kernel,
        out_shape=jax.ShapeDtypeStruct((N, 4, C * H2, W2), x.dtype),
        grid=grid,
        in_specs=[
            # Column selectors: full array, same block every step (stays resident).
            pl.BlockSpec((W, W2), lambda n, j: (0, 0)),
            pl.BlockSpec((W, W2), lambda n, j: (0, 0)),
            # Input: rb contiguous rows per step; N dim squeezed.
            pl.BlockSpec((None, rb, W), lambda n, j: (n, j, 0)),
        ],
        # Output: all 4 parity groups for the same rows; N dim squeezed.
        out_specs=pl.BlockSpec((None, 4, rb // 2, W2), lambda n, j: (n, 0, j, 0)),
        compiler_params=pltpu.CompilerParams(
            dimension_semantics=("parallel", "parallel")),
    )(t_even, t_odd, x_flat)

    # Free reshape (no data movement): (N, 4, C*H2, W2) -> (N, 4C, H2, W2),
    # giving exactly the torch.cat channel ordering (group-major, then channel).
    return out.reshape(N, 4 * C, H2, W2)


def _reference(x):
    return jnp.concatenate(
        [x[..., ::2, ::2], x[..., 1::2, ::2], x[..., ::2, 1::2], x[..., 1::2, 1::2]],
        axis=1)


if __name__ == "__main__":
    key = jax.random.PRNGKey(0)
    N, C, H, W = 2, 4, 16, 16
    x = jax.random.normal(key, (N, C, H, W), dtype=jnp.float32)

    out = space_to_depth(x)
    out = jax.block_until_ready(out)

    ref = _reference(x)
    assert out.shape == (N, 4 * C, H // 2, W // 2)
    assert jnp.max(jnp.abs(out - ref)) < 1e-6, "mismatch vs reference"

    print("KERNEL_OK")
</pallas_src>

<mosaic_0001>
module attributes {stable_mosaic.version = 11 : i64} {
  func.func @_space_to_depth_kernel(%arg0: i32, %arg1: i32, %arg2: memref<16x8xf32, #tpu.memory_space<vmem>>, %arg3: memref<16x8xf32, #tpu.memory_space<vmem>>, %arg4: memref<1x64x16xf32, #tpu.memory_space<vmem>>, %arg5: memref<1x4x32x8xf32, #tpu.memory_space<vmem>>) attributes {dimension_semantics = [#tpu.dimension_semantics<parallel>, #tpu.dimension_semantics<parallel>], iteration_bounds = array<i64: 2, 1>, scalar_prefetch = 0 : i64, scratch_operands = 0 : i64, tpu.core_type = #tpu.core_type<tc>, window_params = [{pipeline_mode = #tpu.pipeline_mode<synchronous>, transform_indices = @transform_0, window_bounds = array<i64: 16, 8>}, {pipeline_mode = #tpu.pipeline_mode<synchronous>, transform_indices = @transform_1, window_bounds = array<i64: 16, 8>}, {transform_indices = @transform_2, window_bounds = array<i64: 1, 64, 16>}, {transform_indices = @transform_3, window_bounds = array<i64: 1, 4, 32, 8>}]} {
    %c0 = arith.constant 0 : index
    %c0_0 = arith.constant 0 : index
    %c0_1 = arith.constant 0 : index
    %0 = tpu.strided_load %arg4[%c0, %c0_0, %c0_1] {strides = array<i32: 1, 2, 1>} : memref<1x64x16xf32, #tpu.memory_space<vmem>>, vector<1x32x16xf32>
    %1 = vector.shape_cast %0 : vector<1x32x16xf32> to vector<32x16xf32>
    %c0_2 = arith.constant 0 : index
    %c1 = arith.constant 1 : index
    %c0_3 = arith.constant 0 : index
    %2 = tpu.strided_load %arg4[%c0_2, %c1, %c0_3] {strides = array<i32: 1, 2, 1>} : memref<1x64x16xf32, #tpu.memory_space<vmem>>, vector<1x32x16xf32>
    %3 = vector.shape_cast %2 : vector<1x32x16xf32> to vector<32x16xf32>
    %c0_4 = arith.constant 0 : index
    %c0_5 = arith.constant 0 : index
    %4 = vector.load %arg2[%c0_4, %c0_5] : memref<16x8xf32, #tpu.memory_space<vmem>>, vector<16x8xf32>
    %c0_6 = arith.constant 0 : index
    %c0_7 = arith.constant 0 : index
    %5 = vector.load %arg3[%c0_6, %c0_7] : memref<16x8xf32, #tpu.memory_space<vmem>>, vector<16x8xf32>
    %cst = arith.constant dense<0.000000e+00> : vector<32x8xf32>
    %6 = tpu.matmul %1, %4, %cst {dimension_numbers = #tpu.dot_dimension_numbers<[1], [0], [0], [1], [0, 0, 1, 1], [], []>} : vector<32x16xf32>, vector<16x8xf32>, vector<32x8xf32> -> vector<32x8xf32>
    %cst_8 = arith.constant dense<0.000000e+00> : vector<32x8xf32>
    %7 = tpu.matmul %3, %4, %cst_8 {dimension_numbers = #tpu.dot_dimension_numbers<[1], [0], [0], [1], [0, 0, 1, 1], [], []>} : vector<32x16xf32>, vector<16x8xf32>, vector<32x8xf32> -> vector<32x8xf32>
    %cst_9 = arith.constant dense<0.000000e+00> : vector<32x8xf32>
    %8 = tpu.matmul %1, %5, %cst_9 {dimension_numbers = #tpu.dot_dimension_numbers<[1], [0], [0], [1], [0, 0, 1, 1], [], []>} : vector<32x16xf32>, vector<16x8xf32>, vector<32x8xf32> -> vector<32x8xf32>
    %cst_10 = arith.constant dense<0.000000e+00> : vector<32x8xf32>
    %9 = tpu.matmul %3, %5, %cst_10 {dimension_numbers = #tpu.dot_dimension_numbers<[1], [0], [0], [1], [0, 0, 1, 1], [], []>} : vector<32x16xf32>, vector<16x8xf32>, vector<32x8xf32> -> vector<32x8xf32>
    %10 = vector.shape_cast %6 : vector<32x8xf32> to vector<1x32x8xf32>
    %11 = vector.shape_cast %7 : vector<32x8xf32> to vector<1x32x8xf32>
    %12 = vector.shape_cast %8 : vector<32x8xf32> to vector<1x32x8xf32>
    %13 = vector.shape_cast %9 : vector<32x8xf32> to vector<1x32x8xf32>
    %14 = tpu.concatenate %10, %11, %12, %13 in 0 : vector<1x32x8xf32>, vector<1x32x8xf32>, vector<1x32x8xf32>, vector<1x32x8xf32> -> vector<4x32x8xf32>
    %c0_11 = arith.constant 0 : index
    %c0_12 = arith.constant 0 : index
    %c0_13 = arith.constant 0 : index
    %c0_14 = arith.constant 0 : index
    %15 = vector.load %arg5[%c0_11, %c0_12, %c0_13, %c0_14] : memref<1x4x32x8xf32, #tpu.memory_space<vmem>>, vector<1x4x32x8xf32>
    %16 = vector.shape_cast %15 : vector<1x4x32x8xf32> to vector<4x32x8xf32>
    %17 = vector.shape_cast %14 : vector<4x32x8xf32> to vector<1x4x32x8xf32>
    tpu.vector_store %arg5[%c0_11, %c0_12, %c0_13, %c0_14], %17 {strides = array<i32>} : memref<1x4x32x8xf32, #tpu.memory_space<vmem>>, vector<1x4x32x8xf32>,
    return
  }
  func.func @transform_0(%arg0: i32, %arg1: i32) -> (i32, i32) {
    %c0_i32 = arith.constant 0 : i32
    %c0_i32_0 = arith.constant 0 : i32
    %c0_i32_1 = arith.constant 0 : i32
    return %c0_i32, %c0_i32_0 : i32, i32
  }
  func.func @transform_1(%arg0: i32, %arg1: i32) -> (i32, i32) {
    %c0_i32 = arith.constant 0 : i32
    %c0_i32_0 = arith.constant 0 : i32
    %c0_i32_1 = arith.constant 0 : i32
    return %c0_i32, %c0_i32_0 : i32, i32
  }
  func.func @transform_2(%arg0: i32, %arg1: i32) -> (i32, i32, i32) {
    %c0_i32 = arith.constant 0 : i32
    %c0_i32_0 = arith.constant 0 : i32
    return %arg0, %arg1, %c0_i32 : i32, i32, i32
  }
  func.func @transform_3(%arg0: i32, %arg1: i32) -> (i32, i32, i32, i32) {
    %c0_i32 = arith.constant 0 : i32
    %c0_i32_0 = arith.constant 0 : i32
    %c0_i32_1 = arith.constant 0 : i32
    return %arg0, %c0_i32, %arg1, %c0_i32_0 : i32, i32, i32, i32
  }
}

</mosaic_0001>

<llo_original>
// kernel: tpu_custom_call.1
$region0: #{tpu_custom_call.1}
  #allocation0 [shape = 'u32[]', space=smem, size = 0x4, offset = 0x4, fixed_abs, tag = 'smem constant byte address 0x4 - core index']
  #allocation1 [shape = 'u32[144,128]{1,0:T(1,128)}', space=vmem, size = 0x12000, scoped, tag = 'internal scratch']
  %s0 = inlined_call_operand.vmem [shape: f32[16,8], index: 0, kind: input, shape index: {}]
  %s1 = inlined_call_operand.vmem [shape: f32[16,8], index: 1, kind: input, shape index: {}]
  %s2 = inlined_call_operand.vmem [shape: f32[2,64,16], index: 2, kind: input, shape index: {}]
  %s3 = inlined_call_operand.vmem [shape: f32[2,4,32,8], index: 3, kind: output, shape index: {}]
  %s4 = sld [smem:[#allocation0]]
  $region45: #{tpu_custom_call.1} parent=0
    _
  %s6 = ssub.s32 1, %s4
  %s7 = scalar_select 0, %s6, %s4
  loop: start=0, step=1, limit=4
  $region2: #{tpu_custom_call.1} parent=0 // loop_pre_header
    _
  $region3: #{tpu_custom_call.1} parent=0 // loop_header
    %s9 = sphi 0, %s13
    %p10 = scmp.ge.s32.totalorder %s9, 4
    %s16 = sphi 0, %s28
    %s17 = sphi 0, %s24
    %s18 = sphi 0, %s16
    %s19 = sphi 0, %s17
    %s20 = sphi 0, %s18
    %s21 = sphi 0, %s19
    %s29 = sphi 0, %s29
    %s31 = sphi 0, %s29
    %s32 = sphi 0, %s31
    %s46 = sphi 0, %s32
    %s50 = sphi 0, %s50
    %s52 = sphi 0, %s50
    %s53 = sphi 0, %s52
    %s67 = sphi 0, %s53
    %s75 = sphi 0, %s77
    %s78 = sphi 0, %s75
    %s79 = sphi 0, %s78
    %s95 = sphi 0, %s79
    %s103 = sphi 0, %s105
    %s106 = sphi 0, %s103
    %s107 = sphi 0, %s106
    %s123 = sphi 0, %s107
  $region4: #{tpu_custom_call.1} parent=0 // loop_header_branch
    %12 = sbr.rel (%p10) target = $region8
  $region5: #{tpu_custom_call.1} parent=0 // loop_body
    %s14 = ssub.s32 %s9, 1
    %s15 = ssub.s32 %s9, 2
    %s22 = sadd.s32 1, %s17
    %p23 = scmp.ge.s32.totalorder %s22, 1
    %s24 = scalar_select %p23, 0, %s22
    %s25 = sadd.s32 1, %s16
    %s26 = scalar_select %p23, %s25, %s16
    %p27 = scmp.ge.s32.totalorder %s26, 2
    %s28 = scalar_select %p27, 0, %s26
    %s30 = sadd.s32 %s29, 1
    %p33 = scmp.eq.s32.totalorder %s9, 1
    %p34 = scmp.ne.s32.totalorder %s29, %s31
    %p35 = scmp.eq.s32.totalorder %s9, 0
    %p36 = por %p34, %p35
    %p37 = scmp.ne.s32.totalorder %s29, %s31
    %p38 = scmp.eq.s32.totalorder %s14, 1
    %p39 = por %p37, %p38
    %p40 = scmp.ne.s32.totalorder %s31, %s32
    %p41 = scmp.eq.s32.totalorder %s14, 0
    %p42 = por %p40, %p41
    %p43 = scmp.ne.s32.totalorder %s31, %s32
    %p44 = scmp.eq.s32.totalorder %s15, 1
    %p45 = por %p43, %p44
    %p47 = scmp.ne.s32.totalorder %s32, %s46
    %p48 = scmp.eq.s32.totalorder %s15, 0
    %p49 = por %p47, %p48
    %s51 = sadd.s32 %s50, 1
    %p54 = scmp.eq.s32.totalorder %s9, 1
    %p55 = scmp.ne.s32.totalorder %s50, %s52
    %p56 = scmp.eq.s32.totalorder %s9, 0
    %p57 = por %p55, %p56
    %p58 = scmp.ne.s32.totalorder %s50, %s52
    %p59 = scmp.eq.s32.totalorder %s14, 1
    %p60 = por %p58, %p59
    %p61 = scmp.ne.s32.totalorder %s52, %s53
    %p62 = scmp.eq.s32.totalorder %s14, 0
    %p63 = por %p61, %p62
    %p64 = scmp.ne.s32.totalorder %s52, %s53
    %p65 = scmp.eq.s32.totalorder %s15, 1
    %p66 = por %p64, %p65
    %p68 = scmp.ne.s32.totalorder %s53, %s67
    %p69 = scmp.eq.s32.totalorder %s15, 0
    %p70 = por %p68, %p69
    %s71 = ssub.s32 %s16, %s28
    %s72 = ssub.s32 %s17, %s24
    %s73 = sor.u32 %s71, %s72
    %p74 = scmp.eq.s32.totalorder %s73, 0
    %s76 = sadd.s32 %s75, 1
    %s77 = scalar_select %p74, %s75, %s76
    %p80 = pneg %p74
    %p81 = scmp.eq.s32.totalorder %s9, 1
    %p82 = por %p80, %p81
    %p83 = scmp.ne.s32.totalorder %s75, %s78
    %p84 = scmp.eq.s32.totalorder %s9, 0
    %p85 = por %p83, %p84
    %p86 = scmp.ne.s32.totalorder %s75, %s78
    %p87 = scmp.eq.s32.totalorder %s14, 1
    %p88 = por %p86, %p87
    %p89 = scmp.ne.s32.totalorder %s78, %s79
    %p90 = scmp.eq.s32.totalorder %s14, 0
    %p91 = por %p89, %p90
    %p92 = scmp.ne.s32.totalorder %s78, %s79
    %p93 = scmp.eq.s32.totalorder %s15, 1
    %p94 = por %p92, %p93
    %p96 = scmp.ne.s32.totalorder %s79, %s95
    %p97 = scmp.eq.s32.totalorder %s15, 0
    %p98 = por %p96, %p97
    %s99 = ssub.s32 %s16, %s28
    %s100 = ssub.s32 %s17, %s24
    %s101 = sor.u32 %s99, %s100
    %p102 = scmp.eq.s32.totalorder %s101, 0
    %s104 = sadd.s32 %s103, 1
    %s105 = scalar_select %p102, %s103, %s104
    %p108 = pneg %p102
    %p109 = scmp.eq.s32.totalorder %s9, 1
    %p110 = por %p108, %p109
    %p111 = scmp.ne.s32.totalorder %s103, %s106
    %p112 = scmp.eq.s32.totalorder %s9, 0
    %p113 = por %p111, %p112
    %p114 = scmp.ne.s32.totalorder %s103, %s106
    %p115 = scmp.eq.s32.totalorder %s14, 1
    %p116 = por %p114, %p115
    %p117 = scmp.ne.s32.totalorder %s106, %s107
    %p118 = scmp.eq.s32.totalorder %s14, 0
    %p119 = por %p117, %p118
    %p120 = scmp.ne.s32.totalorder %s106, %s107
    %p121 = scmp.eq.s32.totalorder %s15, 1
    %p122 = por %p120, %p121
    %p124 = scmp.ne.s32.totalorder %s107, %s123
    %p125 = scmp.eq.s32.totalorder %s15, 0
    %p126 = por %p124, %p125
    %p127 = scmp.le.s32.totalorder 1, %s9
    %p128 = scmp.lt.s32.totalorder %s9, 3
    %p129 = pnand %p127, %p128
    %p130 = pneg %p129
    // Predicated region
    $region9: #{tpu_custom_call.1} parent=5 // pred_check
      _
    $region10: #{tpu_custom_call.1} parent=5 // pred_check_branch
      %132 = sbr.rel (%p129) target = $region12
    $region11: #{tpu_custom_call.1} parent=5 // pred_region
      %s133 = ssub.s32 %s9, 1
      // Predicated region
      $region13: #{tpu_custom_call.1} parent=11 // pred_check
        %p134 = pneg %p42
      $region14: #{tpu_custom_call.1} parent=11 // pred_check_branch
        %136 = sbr.rel (%p134) target = $region16
      $region15: #{tpu_custom_call.1} parent=11 // pred_region
        _
      $region16: #{tpu_custom_call.1} parent=11 // pred_fallthru
        _
      // Predicated region
      $region17: #{tpu_custom_call.1} parent=11 // pred_check
        %p137 = pneg %p63
      $region18: #{tpu_custom_call.1} parent=11 // pred_check_branch
        %139 = sbr.rel (%p137) target = $region20
      $region19: #{tpu_custom_call.1} parent=11 // pred_region
        _
      $region20: #{tpu_custom_call.1} parent=11 // pred_fallthru
        _
    $region12: #{tpu_custom_call.1} parent=5 // pred_fallthru
      _
    %p140 = scmp.lt.s32.totalorder %s9, 2
    // Predicated region
    $region21: #{tpu_custom_call.1} parent=5 // pred_check
      %p141 = pneg %p140
    $region22: #{tpu_custom_call.1} parent=5 // pred_check_branch
      %143 = sbr.rel (%p141) target = $region24
    $region23: #{tpu_custom_call.1} parent=5 // pred_region
      // Predicated region
      $region25: #{tpu_custom_call.1} parent=23 // pred_check
        %p144 = pneg %p85
      $region26: #{tpu_custom_call.1} parent=23 // pred_check_branch
        %146 = sbr.rel (%p144) target = $region28
      $region27: #{tpu_custom_call.1} parent=23 // pred_region
        %s147 = smul.u32 8, %s17
        %p148 = scmp.lt.s32.totalorder %s16, 1
        %s149 = scalar_select %p148, %s16, 1
        %p150 = scmp.lt.s32.totalorder %s147, 7
        %s151 = scalar_select %p150, %s147, 7
        %s152 = smul.addr %s149, 8
        %s153 = sadd.s32 %s151, %s152
        %s154 = smul.addr %s153, 8
        %s155 = scalar_lea.vmem %s2, %s154
        %s156 = smul.u32 8, %s17
      $region28: #{tpu_custom_call.1} parent=23 // pred_fallthru
        _
    $region24: #{tpu_custom_call.1} parent=5 // pred_fallthru
      _
    %p157 = scmp.le.s32.totalorder 1, %s9
    %p158 = scmp.lt.s32.totalorder %s9, 3
    %p159 = pnand %p157, %p158
    %p160 = pneg %p159
    // Predicated region
    $region29: #{tpu_custom_call.1} parent=5 // pred_check
      _
    $region30: #{tpu_custom_call.1} parent=5 // pred_check_branch
      %162 = sbr.rel (%p159) target = $region32
    $region31: #{tpu_custom_call.1} parent=5 // pred_region
      %s163 = ssub.s32 %s9, 1
      %p164 = pneg %p42
      %p165 = pneg %p39
      %p166 = pneg %p63
      %p167 = pneg %p60
      %s168 = smul.u32 8, %s19
      %p169 = scmp.lt.s32.totalorder %s18, 1
      %s170 = scalar_select %p169, %s18, 1
      %p171 = scmp.lt.s32.totalorder %s168, 7
      %s172 = scalar_select %p171, %s168, 7
      %s173 = smul.addr %s170, 8
      %s174 = sadd.s32 %s172, %s173
      %s175 = smul.addr %s174, 8
      %s176 = scalar_lea.vmem %s2, %s175
      %p177 = pneg %p91
      %p178 = pneg %p88
      %p179 = pneg %p119
      %p180 = pneg %p116
      %s181 = smul.u32 4, %s19
      %p182 = scmp.lt.s32.totalorder %s18, 1
      %s183 = scalar_select %p182, %s18, 1
      %p184 = scmp.lt.s32.totalorder %s181, 3
      %s185 = scalar_select %p184, %s181, 3
      %s186 = smul.addr %s183, 16
      %s187 = sadd.s32 %s185, %s186
      %s188 = smul.addr %s187, 8
      %s189 = scalar_lea.vmem %s3, %s188
      %s190 = smul.u32 8, %s19
      %p191 = scmp.lt.s32.totalorder %s18, 1
      %s192 = scalar_select %p191, %s18, 1
      %p193 = scmp.lt.s32.totalorder %s190, 7
      %s194 = scalar_select %p193, %s190, 7
      %s195 = smul.addr %s192, 8
      %s196 = sadd.s32 %s194, %s195
      %s197 = smul.addr %s196, 8
      %s198 = scalar_lea.vmem %s2, %s197
      %s199 = smul.u32 8, %s19
      %s200 = smul.u32 4, %s19
      %p201 = scmp.lt.s32.totalorder %s18, 1
      %s202 = scalar_select %p201, %s18, 1
      %p203 = scmp.lt.s32.totalorder %s200, 3
      %s204 = scalar_select %p203, %s200, 3
      %s205 = smul.addr %s202, 16
      %s206 = sadd.s32 %s204, %s205
      %s207 = smul.addr %s206, 8
      %s208 = scalar_lea.vmem %s3, %s207
      %s209 = smul.u32 4, %s19
      %v210 = vld [vmem:[%s198] ss:$2 sm:$0xff]
      %s211 = scalar_lea.vmem %s198, 16
      %v212 = vld [vmem:[%s211] ss:$2 sm:$0xff]
      %s213 = scalar_lea.vmem %s198, 32
      %v214 = vld [vmem:[%s213] ss:$2 sm:$0xff]
      %s215 = scalar_lea.vmem %s198, 48
      %v216 = vld [vmem:[%s215] ss:$2 sm:$0xff]
      %s217 = scalar_lea.vmem %s198, 1
      %v218 = vld [vmem:[%s217] ss:$2 sm:$0xff]
      %s219 = scalar_lea.vmem %s198, 17
      %v220 = vld [vmem:[%s219] ss:$2 sm:$0xff]
      %s221 = scalar_lea.vmem %s198, 33
      %v222 = vld [vmem:[%s221] ss:$2 sm:$0xff]
      %s223 = scalar_lea.vmem %s198, 49
      %v224 = vld [vmem:[%s223] ss:$2 sm:$0xff]
      %v225 = vld [vmem:[%s0] sm:$0xff]
      %v226 = vld [vmem:[%s0 + $0x8] sm:$0xff]
      %v227 = vld [vmem:[%s1] sm:$0xff]
      %v228 = vld [vmem:[%s1 + $0x8] sm:$0xff]
      %vm229 = vcmask 130048
      %v231 = vsel %vm229, %v210, 0
      %v234 = vsel %vm229, %v212, 0
      %v237 = vsel %vm229, %v214, 0
      %v240 = vsel %vm229, %v216, 0
      %242 = vmatprep.subr.mxu0 0.0
      %243 = vmatpush1.msra.mxu0 %v225
      %244 = vmatprep.subr.mxu0 0.0
      %245 = vmatpush1.msra.mxu0 %v226
      %246 = vmatprep.subr.mxu0 0.0
      %247 = vmatpush1.msra.mxu0 0.0
      %248 = vmatprep.subr.mxu0 0.0
      %249 = vmatpush1.msra.mxu0 0.0
      %250 = vmatprep.subr.mxu0 0.0
      %251 = vmatpush1.msra.mxu0 0.0
      %252 = vmatprep.subr.mxu0 0.0
      %253 = vmatpush1.msra.mxu0 0.0
      %254 = vmatprep.subr.mxu0 0.0
      %255 = vmatpush1.msra.mxu0 0.0
      %256 = vmatprep.subr.mxu0 0.0
      %257 = vmatpush1.msra.mxu0 0.0
      %258 = vmatprep.subr.mxu0 0.0
      %259 = vmatpush1.msra.mxu0 0.0
      %260 = vmatprep.subr.mxu0 0.0
      %261 = vmatpush1.msra.mxu0 0.0
      %262 = vmatprep.subr.mxu0 0.0
      %263 = vmatpush1.msra.mxu0 0.0
      %264 = vmatprep.subr.mxu0 0.0
      %265 = vmatpush1.msra.mxu0 0.0
      %266 = vmatprep.subr.mxu0 0.0
      %267 = vmatpush1.msra.mxu0 0.0
      %268 = vmatprep.subr.mxu0 0.0
      %269 = vmatpush1.msra.mxu0 0.0
      %270 = vmatprep.subr.mxu0 0.0
      %271 = vmatpush1.msra.mxu0 0.0
      %272 = vmatprep.subr.mxu0 0.0
      %273 = vmatpush1.msra.mxu0 0.0
      %274 = vmatprep.subr.mxu0 0.0
      %275 = vmatpush1.msra.mxu0 0.0
      %276 = vmatprep.subr.mxu0 0.0
      %277 = vmatpush1.msra.mxu0 0.0
      %278 = vmatprep.subr.mxu0 0.0
      %279 = vmatpush1.msra.mxu0 0.0
      %280 = vmatprep.subr.mxu0 0.0
      %281 = vmatpush1.msra.mxu0 0.0
      %282 = vmatprep.subr.mxu0 0.0
      %283 = vmatpush1.msra.mxu0 0.0
      %284 = vmatprep.subr.mxu0 0.0
      %285 = vmatpush1.msra.mxu0 0.0
      %286 = vmatprep.subr.mxu0 0.0
      %287 = vmatpush1.msra.mxu0 0.0
      %288 = vmatprep.subr.mxu0 0.0
      %289 = vmatpush1.msra.mxu0 0.0
      %290 = vmatprep.subr.mxu0 0.0
      %291 = vmatpush1.msra.mxu0 0.0
      %292 = vmatprep.subr.mxu0 0.0
      %293 = vmatpush1.msra.mxu0 0.0
      %294 = vmatprep.subr.mxu0 0.0
      %295 = vmatpush1.msra.mxu0 0.0
      %296 = vmatprep.subr.mxu0 0.0
      %297 = vmatpush1.msra.mxu0 0.0
      %298 = vmatprep.subr.mxu0 0.0
      %299 = vmatpush1.msra.mxu0 0.0
      %300 = vmatprep.subr.mxu0 0.0
      %301 = vmatpush1.msra.mxu0 0.0
      %302 = vmatprep.subr.mxu0 0.0
      %303 = vmatpush1.msra.mxu0 0.0
      %304 = vmatprep.subr.mxu0 0.0
      %305 = vmatpush1.msra.mxu0 0.0
      %306 = vmatprep.mubr.f32.mxu0 0.0
      %307 = vmatmul.mubr.f32.gmra.mrb[0].mxu0 %v231
      %v308 = vpop.f32.mrb[0].mxu0
      %v309 = vadd.f32 0.0, %v308
      %v310 = vpop.f32.mrb[0].mxu0
      %311 = vmatprep.mubr.f32.mxu0 0.0
      %312 = vmatmul.mubr.f32.gmra.mrb[0].mxu0 %v234
      %v313 = vpop.f32.mrb[0].mxu0
      %v314 = vadd.f32 0.0, %v313
      %v315 = vpop.f32.mrb[0].mxu0
      %316 = vmatprep.mubr.f32.mxu0 0.0
      %317 = vmatmul.mubr.f32.gmra.mrb[0].mxu0 %v237
      %v318 = vpop.f32.mrb[0].mxu0
      %v319 = vadd.f32 0.0, %v318
      %v320 = vpop.f32.mrb[0].mxu0
      %321 = vmatprep.mubr.f32.mxu0 0.0
      %322 = vmatmul.mubr.f32.gmra.mrb[0].mxu0 %v240
      %v323 = vpop.f32.mrb[0].mxu0
      %v324 = vadd.f32 0.0, %v323
      %v325 = vpop.f32.mrb[0].mxu0
      %326 = vdwg.mxu0
      %v328 = vsel %vm229, %v218, 0
      %v331 = vsel %vm229, %v220, 0
      %v334 = vsel %vm229, %v222, 0
      %v337 = vsel %vm229, %v224, 0
      %339 = vmatprep.subr.mxu0 0.0
      %340 = vmatpush1.msra.mxu0 %v225
      %341 = vmatprep.subr.mxu0 0.0
      %342 = vmatpush1.msra.mxu0 %v226
      %343 = vmatprep.subr.mxu0 0.0
      %344 = vmatpush1.msra.mxu0 0.0
      %345 = vmatprep.subr.mxu0 0.0
      %346 = vmatpush1.msra.mxu0 0.0
      %347 = vmatprep.subr.mxu0 0.0
      %348 = vmatpush1.msra.mxu0 0.0
      %349 = vmatprep.subr.mxu0 0.0
      %350 = vmatpush1.msra.mxu0 0.0
      %351 = vmatprep.subr.mxu0 0.0
      %352 = vmatpush1.msra.mxu0 0.0
      %353 = vmatprep.subr.mxu0 0.0
      %354 = vmatpush1.msra.mxu0 0.0
      %355 = vmatprep.subr.mxu0 0.0
      %356 = vmatpush1.msra.mxu0 0.0
      %357 = vmatprep.subr.mxu0 0.0
      %358 = vmatpush1.msra.mxu0 0.0
      %359 = vmatprep.subr.mxu0 0.0
      %360 = vmatpush1.msra.mxu0 0.0
      %361 = vmatprep.subr.mxu0 0.0
      %362 = vmatpush1.msra.mxu0 0.0
      %363 = vmatprep.subr.mxu0 0.0
      %364 = vmatpush1.msra.mxu0 0.0
      %365 = vmatprep.subr.mxu0 0.0
      %366 = vmatpush1.msra.mxu0 0.0
      %367 = vmatprep.subr.mxu0 0.0
      %368 = vmatpush1.msra.mxu0 0.0
      %369 = vmatprep.subr.mxu0 0.0
      %370 = vmatpush1.msra.mxu0 0.0
      %371 = vmatprep.subr.mxu0 0.0
      %372 = vmatpush1.msra.mxu0 0.0
      %373 = vmatprep.subr.mxu0 0.0
      %374 = vmatpush1.msra.mxu0 0.0
      %375 = vmatprep.subr.mxu0 0.0
      %376 = vmatpush1.msra.mxu0 0.0
      %377 = vmatprep.subr.mxu0 0.0
      %378 = vmatpush1.msra.mxu0 0.0
      %379 = vmatprep.subr.mxu0 0.0
      %380 = vmatpush1.msra.mxu0 0.0
      %381 = vmatprep.subr.mxu0 0.0
      %382 = vmatpush1.msra.mxu0 0.0
      %383 = vmatprep.subr.mxu0 0.0
      %384 = vmatpush1.msra.mxu0 0.0
      %385 = vmatprep.subr.mxu0 0.0
      %386 = vmatpush1.msra.mxu0 0.0
      %387 = vmatprep.subr.mxu0 0.0
      %388 = vmatpush1.msra.mxu0 0.0
      %389 = vmatprep.subr.mxu0 0.0
      %390 = vmatpush1.msra.mxu0 0.0
      %391 = vmatprep.subr.mxu0 0.0
      %392 = vmatpush1.msra.mxu0 0.0
      %393 = vmatprep.subr.mxu0 0.0
      %394 = vmatpush1.msra.mxu0 0.0
      %395 = vmatprep.subr.mxu0 0.0
      %396 = vmatpush1.msra.mxu0 0.0
      %397 = vmatprep.subr.mxu0 0.0
      %398 = vmatpush1.msra.mxu0 0.0
      %399 = vmatprep.subr.mxu0 0.0
      %400 = vmatpush1.msra.mxu0 0.0
      %401 = vmatprep.subr.mxu0 0.0
      %402 = vmatpush1.msra.mxu0 0.0
      %403 = vmatprep.mubr.f32.mxu0 0.0
      %404 = vmatmul.mubr.f32.gmra.mrb[0].mxu0 %v328
      %v405 = vpop.f32.mrb[0].mxu0
      %v406 = vadd.f32 0.0, %v405
      %v407 = vpop.f32.mrb[0].mxu0
      %408 = vmatprep.mubr.f32.mxu0 0.0
      %409 = vmatmul.mubr.f32.gmra.mrb[0].mxu0 %v331
      %v410 = vpop.f32.mrb[0].mxu0
      %v411 = vadd.f32 0.0, %v410
      %v412 = vpop.f32.mrb[0].mxu0
      %413 = vmatprep.mubr.f32.mxu0 0.0
      %414 = vmatmul.mubr.f32.gmra.mrb[0].mxu0 %v334
      %v415 = vpop.f32.mrb[0].mxu0
      %v416 = vadd.f32 0.0, %v415
      %v417 = vpop.f32.mrb[0].mxu0
      %418 = vmatprep.mubr.f32.mxu0 0.0
      %419 = vmatmul.mubr.f32.gmra.mrb[0].mxu0 %v337
      %v420 = vpop.f32.mrb[0].mxu0
      %v421 = vadd.f32 0.0, %v420
      %v422 = vpop.f32.mrb[0].mxu0
      %423 = vdwg.mxu0
      %424 = vmatprep.subr.mxu0 0.0
      %425 = vmatpush1.msra.mxu0 %v227
      %426 = vmatprep.subr.mxu0 0.0
      %427 = vmatpush1.msra.mxu0 %v228
      %428 = vmatprep.subr.mxu0 0.0
      %429 = vmatpush1.msra.mxu0 0.0
      %430 = vmatprep.subr.mxu0 0.0
      %431 = vmatpush1.msra.mxu0 0.0
      %432 = vmatprep.subr.mxu0 0.0
      %433 = vmatpush1.msra.mxu0 0.0
      %434 = vmatprep.subr.mxu0 0.0
      %435 = vmatpush1.msra.mxu0 0.0
      %436 = vmatprep.subr.mxu0 0.0
      %437 = vmatpush1.msra.mxu0 0.0
      %438 = vmatprep.subr.mxu0 0.0
      %439 = vmatpush1.msra.mxu0 0.0
      %440 = vmatprep.subr.mxu0 0.0
      %441 = vmatpush1.msra.mxu0 0.0
      %442 = vmatprep.subr.mxu0 0.0
      %443 = vmatpush1.msra.mxu0 0.0
      %444 = vmatprep.subr.mxu0 0.0
      %445 = vmatpush1.msra.mxu0 0.0
      %446 = vmatprep.subr.mxu0 0.0
      %447 = vmatpush1.msra.mxu0 0.0
      %448 = vmatprep.subr.mxu0 0.0
      %449 = vmatpush1.msra.mxu0 0.0
      %450 = vmatprep.subr.mxu0 0.0
      %451 = vmatpush1.msra.mxu0 0.0
      %452 = vmatprep.subr.mxu0 0.0
      %453 = vmatpush1.msra.mxu0 0.0
      %454 = vmatprep.subr.mxu0 0.0
      %455 = vmatpush1.msra.mxu0 0.0
      %456 = vmatprep.subr.mxu0 0.0
      %457 = vmatpush1.msra.mxu0 0.0
      %458 = vmatprep.subr.mxu0 0.0
      %459 = vmatpush1.msra.mxu0 0.0
      %460 = vmatprep.subr.mxu0 0.0
      %461 = vmatpush1.msra.mxu0 0.0
      %462 = vmatprep.subr.mxu0 0.0
      %463 = vmatpush1.msra.mxu0 0.0
      %464 = vmatprep.subr.mxu0 0.0
      %465 = vmatpush1.msra.mxu0 0.0
      %466 = vmatprep.subr.mxu0 0.0
      %467 = vmatpush1.msra.mxu0 0.0
      %468 = vmatprep.subr.mxu0 0.0
      %469 = vmatpush1.msra.mxu0 0.0
      %470 = vmatprep.subr.mxu0 0.0
      %471 = vmatpush1.msra.mxu0 0.0
      %472 = vmatprep.subr.mxu0 0.0
      %473 = vmatpush1.msra.mxu0 0.0
      %474 = vmatprep.subr.mxu0 0.0
      %475 = vmatpush1.msra.mxu0 0.0
      %476 = vmatprep.subr.mxu0 0.0
      %477 = vmatpush1.msra.mxu0 0.0
      %478 = vmatprep.subr.mxu0 0.0
      %479 = vmatpush1.msra.mxu0 0.0
      %480 = vmatprep.subr.mxu0 0.0
      %481 = vmatpush1.msra.mxu0 0.0
      %482 = vmatprep.subr.mxu0 0.0
      %483 = vmatpush1.msra.mxu0 0.0
      %484 = vmatprep.subr.mxu0 0.0
      %485 = vmatpush1.msra.mxu0 0.0
      %486 = vmatprep.subr.mxu0 0.0
      %487 = vmatpush1.msra.mxu0 0.0
      %488 = vmatprep.mubr.f32.mxu0 0.0
      %489 = vmatmul.mubr.f32.gmra.mrb[0].mxu0 %v231
      %v490 = vpop.f32.mrb[0].mxu0
      %v491 = vadd.f32 0.0, %v490
      %v492 = vpop.f32.mrb[0].mxu0
      %493 = vmatprep.mubr.f32.mxu0 0.0
      %494 = vmatmul.mubr.f32.gmra.mrb[0].mxu0 %v234
      %v495 = vpop.f32.mrb[0].mxu0
      %v496 = vadd.f32 0.0, %v495
      %v497 = vpop.f32.mrb[0].mxu0
      %498 = vmatprep.mubr.f32.mxu0 0.0
      %499 = vmatmul.mubr.f32.gmra.mrb[0].mxu0 %v237
      %v500 = vpop.f32.mrb[0].mxu0
      %v501 = vadd.f32 0.0, %v500
      %v502 = vpop.f32.mrb[0].mxu0
      %503 = vmatprep.mubr.f32.mxu0 0.0
      %504 = vmatmul.mubr.f32.gmra.mrb[0].mxu0 %v240
      %v505 = vpop.f32.mrb[0].mxu0
      %v506 = vadd.f32 0.0, %v505
      %v507 = vpop.f32.mrb[0].mxu0
      %508 = vdwg.mxu0
      %509 = vmatprep.subr.mxu0 0.0
      %510 = vmatpush1.msra.mxu0 %v227
      %511 = vmatprep.subr.mxu0 0.0
      %512 = vmatpush1.msra.mxu0 %v228
      %513 = vmatprep.subr.mxu0 0.0
      %514 = vmatpush1.msra.mxu0 0.0
      %515 = vmatprep.subr.mxu0 0.0
      %516 = vmatpush1.msra.mxu0 0.0
      %517 = vmatprep.subr.mxu0 0.0
      %518 = vmatpush1.msra.mxu0 0.0
      %519 = vmatprep.subr.mxu0 0.0
      %520 = vmatpush1.msra.mxu0 0.0
      %521 = vmatprep.subr.mxu0 0.0
      %522 = vmatpush1.msra.mxu0 0.0
      %523 = vmatprep.subr.mxu0 0.0
      %524 = vmatpush1.msra.mxu0 0.0
      %525 = vmatprep.subr.mxu0 0.0
      %526 = vmatpush1.msra.mxu0 0.0
      %527 = vmatprep.subr.mxu0 0.0
      %528 = vmatpush1.msra.mxu0 0.0
      %529 = vmatprep.subr.mxu0 0.0
      %530 = vmatpush1.msra.mxu0 0.0
      %531 = vmatprep.subr.mxu0 0.0
      %532 = vmatpush1.msra.mxu0 0.0
      %533 = vmatprep.subr.mxu0 0.0
      %534 = vmatpush1.msra.mxu0 0.0
      %535 = vmatprep.subr.mxu0 0.0
      %536 = vmatpush1.msra.mxu0 0.0
      %537 = vmatprep.subr.mxu0 0.0
      %538 = vmatpush1.msra.mxu0 0.0
      %539 = vmatprep.subr.mxu0 0.0
      %540 = vmatpush1.msra.mxu0 0.0
      %541 = vmatprep.subr.mxu0 0.0
      %542 = vmatpush1.msra.mxu0 0.0
      %543 = vmatprep.subr.mxu0 0.0
      %544 = vmatpush1.msra.mxu0 0.0
      %545 = vmatprep.subr.mxu0 0.0
      %546 = vmatpush1.msra.mxu0 0.0
      %547 = vmatprep.subr.mxu0 0.0
      %548 = vmatpush1.msra.mxu0 0.0
      %549 = vmatprep.subr.mxu0 0.0
      %550 = vmatpush1.msra.mxu0 0.0
      %551 = vmatprep.subr.mxu0 0.0
      %552 = vmatpush1.msra.mxu0 0.0
      %553 = vmatprep.subr.mxu0 0.0
      %554 = vmatpush1.msra.mxu0 0.0
      %555 = vmatprep.subr.mxu0 0.0
      %556 = vmatpush1.msra.mxu0 0.0
      %557 = vmatprep.subr.mxu0 0.0
      %558 = vmatpush1.msra.mxu0 0.0
      %559 = vmatprep.subr.mxu0 0.0
      %560 = vmatpush1.msra.mxu0 0.0
      %561 = vmatprep.subr.mxu0 0.0
      %562 = vmatpush1.msra.mxu0 0.0
      %563 = vmatprep.subr.mxu0 0.0
      %564 = vmatpush1.msra.mxu0 0.0
      %565 = vmatprep.subr.mxu0 0.0
      %566 = vmatpush1.msra.mxu0 0.0
      %567 = vmatprep.subr.mxu0 0.0
      %568 = vmatpush1.msra.mxu0 0.0
      %569 = vmatprep.subr.mxu0 0.0
      %570 = vmatpush1.msra.mxu0 0.0
      %571 = vmatprep.subr.mxu0 0.0
      %572 = vmatpush1.msra.mxu0 0.0
      %573 = vmatprep.mubr.f32.mxu0 0.0
      %574 = vmatmul.mubr.f32.gmra.mrb[0].mxu0 %v328
      %v575 = vpop.f32.mrb[0].mxu0
      %v576 = vadd.f32 0.0, %v575
      %v577 = vpop.f32.mrb[0].mxu0
      %578 = vmatprep.mubr.f32.mxu0 0.0
      %579 = vmatmul.mubr.f32.gmra.mrb[0].mxu0 %v331
      %v580 = vpop.f32.mrb[0].mxu0
      %v581 = vadd.f32 0.0, %v580
      %v582 = vpop.f32.mrb[0].mxu0
      %583 = vmatprep.mubr.f32.mxu0 0.0
      %584 = vmatmul.mubr.f32.gmra.mrb[0].mxu0 %v334
      %v585 = vpop.f32.mrb[0].mxu0
      %v586 = vadd.f32 0.0, %v585
      %v587 = vpop.f32.mrb[0].mxu0
      %588 = vmatprep.mubr.f32.mxu0 0.0
      %589 = vmatmul.mubr.f32.gmra.mrb[0].mxu0 %v337
      %v590 = vpop.f32.mrb[0].mxu0
      %v591 = vadd.f32 0.0, %v590
      %v592 = vpop.f32.mrb[0].mxu0
      %593 = vdwg.mxu0
      %vm594 = vcmask 64512
      %595 = vst.msk [vmem:[%s208] sm:$0xff] %vm594, %v309
      %596 = vst.msk [vmem:[%s208 + $0x8] sm:$0xff] %vm594, %v314
      %597 = vst.msk [vmem:[%s208 + $0x10] sm:$0xff] %vm594, %v319
      %598 = vst.msk [vmem:[%s208 + $0x18] sm:$0xff] %vm594, %v324
      %599 = vst.msk [vmem:[%s208 + $0x20] sm:$0xff] %vm594, %v406
      %600 = vst.msk [vmem:[%s208 + $0x28] sm:$0xff] %vm594, %v411
      %601 = vst.msk [vmem:[%s208 + $0x30] sm:$0xff] %vm594, %v416
      %602 = vst.msk [vmem:[%s208 + $0x38] sm:$0xff] %vm594, %v421
      %603 = vst.msk [vmem:[%s208 + $0x40] sm:$0xff] %vm594, %v491
      %604 = vst.msk [vmem:[%s208 + $0x48] sm:$0xff] %vm594, %v496
      %605 = vst.msk [vmem:[%s208 + $0x50] sm:$0xff] %vm594, %v501
      %606 = vst.msk [vmem:[%s208 + $0x58] sm:$0xff] %vm594, %v506
      %607 = vst.msk [vmem:[%s208 + $0x60] sm:$0xff] %vm594, %v576
      %608 = vst.msk [vmem:[%s208 + $0x68] sm:$0xff] %vm594, %v581
      %609 = vst.msk [vmem:[%s208 + $0x70] sm:$0xff] %vm594, %v586
      %610 = vst.msk [vmem:[%s208 + $0x78] sm:$0xff] %vm594, %v591
      %s611 = smul.u32 4, %s19
      %p612 = scmp.lt.s32.totalorder %s18, 1
      %s613 = scalar_select %p612, %s18, 1
      %p614 = scmp.lt.s32.totalorder %s611, 3
      %s615 = scalar_select %p614, %s611, 3
      %s616 = smul.addr %s613, 16
      %s617 = sadd.s32 %s615, %s616
      %s618 = smul.addr %s617, 8
      %s619 = scalar_lea.vmem %s3, %s618
      // Predicated region
      $region33: #{tpu_custom_call.1} parent=31 // pred_check
        %p620 = pneg %p116
      $region34: #{tpu_custom_call.1} parent=31 // pred_check_branch
        %622 = sbr.rel (%p620) target = $region36
      $region35: #{tpu_custom_call.1} parent=31 // pred_region
        %s623 = smul.u32 4, %s19
      $region36: #{tpu_custom_call.1} parent=31 // pred_fallthru
        _
    $region32: #{tpu_custom_call.1} parent=5 // pred_fallthru
      _
    %p624 = scmp.le.s32.totalorder 2, %s9
    // Predicated region
    $region37: #{tpu_custom_call.1} parent=5 // pred_check
      %p625 = pneg %p624
    $region38: #{tpu_custom_call.1} parent=5 // pred_check_branch
      %627 = sbr.rel (%p625) target = $region40
    $region39: #{tpu_custom_call.1} parent=5 // pred_region
      %s628 = ssub.s32 %s9, 2
      // Predicated region
      $region41: #{tpu_custom_call.1} parent=39 // pred_check
        %p629 = pneg %p122
      $region42: #{tpu_custom_call.1} parent=39 // pred_check_branch
        %631 = sbr.rel (%p629) target = $region44
      $region43: #{tpu_custom_call.1} parent=39 // pred_region
        %s632 = smul.u32 4, %s21
        %p633 = scmp.lt.s32.totalorder %s20, 1
        %s634 = scalar_select %p633, %s20, 1
        %p635 = scmp.lt.s32.totalorder %s632, 3
        %s636 = scalar_select %p635, %s632, 3
        %s637 = smul.addr %s634, 16
        %s638 = sadd.s32 %s636, %s637
        %s639 = smul.addr %s638, 8
        %s640 = scalar_lea.vmem %s3, %s639
      $region44: #{tpu_custom_call.1} parent=39 // pred_fallthru
        _
    $region40: #{tpu_custom_call.1} parent=5 // pred_fallthru
      _
  $region6: #{tpu_custom_call.1} parent=0 // loop_footer
    %s13 = sadd.s32 1, %s9
  $region7: #{tpu_custom_call.1} parent=0 // loop_footer_branch
    %8 = sbr.rel target = $region3
  $region8: #{tpu_custom_call.1} parent=0 // loop_exit
    _

</llo_original>
